<compile_context>
chip_gen: v7x
topology: tpu7x:2x2x1
jax: 0.10.0
libtpu: 0.0.40
codegen_flags: <defaults>
</compile_context>

<pallas_src>
import functools

import jax
import jax.numpy as jnp
from jax.experimental import pallas as pl
from jax.experimental.pallas import tpu as pltpu

# Module hyper-parameters (deterministic, from FocalLoss.__init__ defaults).
GAMMA = 2
ALPHA = 0.5
EPS = 1e-6

# Default batch-tile size.  VMEM budget per step (double buffered):
#   2 * (TB*C*4  +  TB*128*4)   # logits tile + lane-padded (TB,1) int32 labels
# For TB=1024, C<=512 this is < 5 MiB — comfortably inside the scoped-VMEM
# defaults on v5e (16 MiB), v6e (32 MiB) and v7x (32 MiB scoped / 64 MiB
# physical), while large enough to amortize the ~0.35 us per-step overhead.
DEFAULT_TILE_ROWS = 1024


def _focal_loss_kernel(y_pred_ref, y_true_ref, out_ref, *, batch_size, tile_rows):
    # y_pred_ref: (TB, C) logits tile (any float dtype); y_true_ref: (TB, 1) int32.
    i = pl.program_id(0)

    logits = y_pred_ref[...].astype(jnp.float32)              # single in-kernel cast
    labels = y_true_ref[...]                                   # (TB, 1) int32
    tb, c = logits.shape

    # Numerically-stable softmax numerator/denominator along the lane (class)
    # axis.  The full probability matrix is never normalized.
    m = jnp.max(logits, axis=-1, keepdims=True)                # (TB, 1)
    ex = jnp.exp(logits - m)                                    # (TB, C) — only (TB,C) EUP op
    denom = jnp.sum(ex, axis=-1, keepdims=True)                 # (TB, 1)

    # one_hot(y_true, C) from a class-index iota; pt numerator via masked sum.
    cls_ids = jax.lax.broadcasted_iota(jnp.int32, (tb, c), 1)
    one_hot = (cls_ids == labels).astype(jnp.float32)           # (TB, C)
    num = jnp.sum(ex * one_hot, axis=-1, keepdims=True)         # (TB, 1)

    # pt = softmax(logits)[y_true]; one per-row approximate EUP reciprocal
    # instead of a (TB, C) divide.
    pt = num * pl.reciprocal(denom, approx=True)                # (TB, 1)

    # alpha_t gathered at the true class is identically ALPHA (each row of
    # one_hot has exactly one 1), so the gather folds to the constant.
    one_minus_pt = 1.0 - pt
    focal_w = one_minus_pt * one_minus_pt                       # gamma == 2
    loss = (-ALPHA) * focal_w * jnp.log(pt + EPS)               # (TB, 1)

    # Mask out padded rows of a partial last tile (they may contain stale,
    # possibly non-finite VMEM data); divide-by-B happens once in the wrapper.
    row_ids = jax.lax.broadcasted_iota(jnp.int32, (tb, 1), 0) + i * tile_rows
    loss = jnp.where(row_ids < batch_size, loss, 0.0)

    # Lane-dense partial-sum write: one (1, 1, 128) block per grid step.
    out_ref[...] = jnp.broadcast_to(jnp.sum(loss), (1, 1, 128))


def focal_loss(y_pred, y_true, *, tile_rows=DEFAULT_TILE_ROWS):
    """y_pred: (B, C) logits (f32 or bf16), y_true: (B,) int class ids.

    Returns the scalar mean focal loss (gamma=2, alpha=0.5, eps=1e-6).
    """
    B, C = y_pred.shape

    # Tile size: the full batch if it fits in one tile, otherwise a multiple
    # of 8 (sublane alignment).  Remainder tiles are masked in-kernel.
    tb = min(tile_rows, B)
    if tb != B:
        tb = max(8, (tb // 8) * 8)
    num_tiles = pl.cdiv(B, tb)

    # NOTE: the (TB, 1) int32 label block is lane-padded to TB x 128 words in
    # VMEM; this is accounted for in the DEFAULT_TILE_ROWS budget above.
    y_true2 = y_true.astype(jnp.int32).reshape(B, 1)

    kernel = functools.partial(_focal_loss_kernel, batch_size=B, tile_rows=tb)

    partial_sums = pl.pallas_call(
        kernel,
        out_shape=jax.ShapeDtypeStruct((num_tiles, 1, 128), jnp.float32),
        grid=(num_tiles,),
        in_specs=[
            pl.BlockSpec((tb, C), lambda i: (i, 0)),
            pl.BlockSpec((tb, 1), lambda i: (i, 0)),
        ],
        out_specs=pl.BlockSpec((1, 1, 128), lambda i: (i, 0, 0)),
        compiler_params=pltpu.CompilerParams(
            dimension_semantics=("parallel",),
        ),
    )(y_pred, y_true2)

    # Final reduction over the (tiny) per-tile partials; divide by the true B.
    return jnp.sum(partial_sums[:, 0, 0]) * (1.0 / B)


def focal_loss_ref(y_pred, y_true):
    """Pure-JAX reference mirroring the PyTorch module."""
    B, C = y_pred.shape
    probs = jax.nn.softmax(y_pred.astype(jnp.float32), axis=-1)
    one_hot = jax.nn.one_hot(y_true, C, dtype=jnp.float32)
    pt = jnp.sum(probs * one_hot, axis=-1)
    alpha_t = ALPHA * one_hot + (1.0 - ALPHA) * (1.0 - one_hot)
    alpha_g = jnp.take_along_axis(alpha_t, y_true[:, None], axis=1)[:, 0]
    focal_w = (1.0 - pt) ** GAMMA
    loss = -alpha_g * focal_w * jnp.log(pt + EPS)
    return jnp.mean(loss)


if __name__ == "__main__":
    key = jax.random.PRNGKey(0)
    k1, k2, k3, k4 = jax.random.split(key, 4)

    # Case 1: small single-tile batch.
    batch_size, n_classes = 8, 32
    y_pred = jax.random.normal(k1, (batch_size, n_classes), dtype=jnp.float32)
    y_true = jax.random.randint(k2, (batch_size,), 0, n_classes, dtype=jnp.int32)

    out = focal_loss(y_pred, y_true)
    out = jax.block_until_ready(out)
    ref = focal_loss_ref(y_pred, y_true)
    # rtol accounts for the approximate EUP reciprocal used for 1/denom.
    assert jnp.allclose(out, ref, rtol=2e-3, atol=1e-6), (out, ref)

    # Case 2: multi-tile grid with a masked remainder tile (40 rows, TB=16 -> 3 tiles).
    batch_size2, n_classes2 = 40, 16
    y_pred2 = jax.random.normal(k3, (batch_size2, n_classes2), dtype=jnp.float32)
    y_true2 = jax.random.randint(k4, (batch_size2,), 0, n_classes2, dtype=jnp.int32)

    out2 = focal_loss(y_pred2, y_true2, tile_rows=16)
    out2 = jax.block_until_ready(out2)
    ref2 = focal_loss_ref(y_pred2, y_true2)
    assert jnp.allclose(out2, ref2, rtol=2e-3, atol=1e-6), (out2, ref2)

    print("KERNEL_OK")
</pallas_src>

<mosaic_0001>
module attributes {stable_mosaic.version = 11 : i64} {
  func.func @_focal_loss_kernel(%arg0: i32, %arg1: memref<8x32xf32, #tpu.memory_space<vmem>>, %arg2: memref<8x1xi32, #tpu.memory_space<vmem>>, %arg3: memref<1x1x128xf32, #tpu.memory_space<vmem>>) attributes {dimension_semantics = [#tpu.dimension_semantics<parallel>], iteration_bounds = array<i64: 1>, scalar_prefetch = 0 : i64, scratch_operands = 0 : i64, tpu.core_type = #tpu.core_type<tc>, window_params = [{transform_indices = @transform_0, window_bounds = array<i64: 8, 32>}, {transform_indices = @transform_1, window_bounds = array<i64: 8, 1>}, {transform_indices = @transform_2, window_bounds = array<i64: 1, 1, 128>}]} {
    %c0 = arith.constant 0 : index
    %c0_0 = arith.constant 0 : index
    %0 = vector.load %arg1[%c0, %c0_0] : memref<8x32xf32, #tpu.memory_space<vmem>>, vector<8x32xf32>
    %c0_1 = arith.constant 0 : index
    %c0_2 = arith.constant 0 : index
    %1 = vector.load %arg2[%c0_1, %c0_2] : memref<8x1xi32, #tpu.memory_space<vmem>>, vector<8x1xi32>
    %cst = arith.constant dense<0xFF800000> : vector<8xf32>
    %2 = vector.multi_reduction <maximumf>, %0, %cst [1] : vector<8x32xf32> to vector<8xf32>
    %3 = vector.shape_cast %2 : vector<8xf32> to vector<8x1xf32>
    %4 = vector.broadcast %3 : vector<8x1xf32> to vector<8x32xf32>
    %5 = arith.subf %0, %4 : vector<8x32xf32>
    %6 = math.exp %5 : vector<8x32xf32>
    %cst_3 = arith.constant dense<0.000000e+00> : vector<8xf32>
    %7 = vector.multi_reduction <add>, %6, %cst_3 [1] : vector<8x32xf32> to vector<8xf32>
    %8 = vector.shape_cast %7 : vector<8xf32> to vector<8x1xf32>
    %9 = tpu.iota {dimensions = array<i32: 1>} : vector<8x32xi32>
    %10 = vector.broadcast %1 : vector<8x1xi32> to vector<8x32xi32>
    %11 = arith.cmpi eq, %9, %10 : vector<8x32xi32>
    %12 = arith.extui %11 : vector<8x32xi1> to vector<8x32xi32>
    %13 = arith.sitofp %12 : vector<8x32xi32> to vector<8x32xf32>
    %14 = arith.mulf %6, %13 : vector<8x32xf32>
    %cst_4 = arith.constant dense<0.000000e+00> : vector<8xf32>
    %15 = vector.multi_reduction <add>, %14, %cst_4 [1] : vector<8x32xf32> to vector<8xf32>
    %16 = vector.shape_cast %15 : vector<8xf32> to vector<8x1xf32>
    %17 = tpu.reciprocal %8 {approx = true} : vector<8x1xf32> -> vector<8x1xf32>
    %18 = arith.mulf %16, %17 : vector<8x1xf32>
    %cst_5 = arith.constant 1.000000e+00 : f32
    %19 = vector.broadcast %cst_5 : f32 to vector<8x1xf32>
    %20 = arith.subf %19, %18 : vector<8x1xf32>
    %21 = arith.mulf %20, %20 : vector<8x1xf32>
    %cst_6 = arith.constant -5.000000e-01 : f32
    %22 = vector.broadcast %cst_6 : f32 to vector<8x1xf32>
    %23 = arith.mulf %22, %21 : vector<8x1xf32>
    %cst_7 = arith.constant 9.99999997E-7 : f32
    %24 = vector.broadcast %cst_7 : f32 to vector<8x1xf32>
    %25 = arith.addf %18, %24 : vector<8x1xf32>
    %26 = math.log %25 : vector<8x1xf32>
    %27 = arith.mulf %23, %26 : vector<8x1xf32>
    %28 = tpu.iota {dimensions = array<i32: 0>} : vector<8x1xi32>
    %c8_i32 = arith.constant 8 : i32
    %29 = arith.muli %arg0, %c8_i32 : i32
    %30 = vector.broadcast %29 : i32 to vector<8x1xi32>
    %31 = arith.addi %28, %30 : vector<8x1xi32>
    %c8_i32_8 = arith.constant 8 : i32
    %32 = vector.broadcast %c8_i32_8 : i32 to vector<8x1xi32>
    %33 = arith.cmpi slt, %31, %32 : vector<8x1xi32>
    %cst_9 = arith.constant 0.000000e+00 : f32
    %34 = vector.broadcast %cst_9 : f32 to vector<8x1xf32>
    %35 = arith.select %33, %27, %34 : vector<8x1xi1>, vector<8x1xf32>
    %36 = vector.shape_cast %35 : vector<8x1xf32> to vector<1x8x1xf32>
    %cst_10 = arith.constant dense<0.000000e+00> : vector<1xf32>
    %37 = vector.multi_reduction <add>, %36, %cst_10 [1, 2] : vector<1x8x1xf32> to vector<1xf32>
    %38 = vector.shape_cast %37 : vector<1xf32> to vector<1x1x1xf32>
    %39 = vector.extract %38[0, 0, 0] : f32 from vector<1x1x1xf32>
    %40 = vector.broadcast %39 : f32 to vector<1x1x128xf32>
    %c0_11 = arith.constant 0 : index
    %c0_12 = arith.constant 0 : index
    %c0_13 = arith.constant 0 : index
    %41 = vector.load %arg3[%c0_11, %c0_12, %c0_13] : memref<1x1x128xf32, #tpu.memory_space<vmem>>, vector<1x1x128xf32>
    tpu.vector_store %arg3[%c0_11, %c0_12, %c0_13], %40 {strides = array<i32>} : memref<1x1x128xf32, #tpu.memory_space<vmem>>, vector<1x1x128xf32>,
    return
  }
  func.func @transform_0(%arg0: i32) -> (i32, i32) {
    %c0_i32 = arith.constant 0 : i32
    %c0_i32_0 = arith.constant 0 : i32
    return %arg0, %c0_i32 : i32, i32
  }
  func.func @transform_1(%arg0: i32) -> (i32, i32) {
    %c0_i32 = arith.constant 0 : i32
    %c0_i32_0 = arith.constant 0 : i32
    return %arg0, %c0_i32 : i32, i32
  }
  func.func @transform_2(%arg0: i32) -> (i32, i32, i32) {
    %c0_i32 = arith.constant 0 : i32
    %c0_i32_0 = arith.constant 0 : i32
    %c0_i32_1 = arith.constant 0 : i32
    return %arg0, %c0_i32, %c0_i32_0 : i32, i32, i32
  }
}

</mosaic_0001>

<llo_original>
// kernel: tpu_custom_call.1
$region0: #{tpu_custom_call.1}
  #allocation0 [shape = 'u32[]', space=smem, size = 0x4, offset = 0x4, fixed_abs, tag = 'smem constant byte address 0x4 - core index']
  #allocation1 [shape = 'u32[144,128]{1,0:T(1,128)}', space=vmem, size = 0x12000, scoped, tag = 'internal scratch']
  %s0 = inlined_call_operand.vmem [shape: f32[8,32], index: 0, kind: input, shape index: {}]
  %s1 = inlined_call_operand.vmem [shape: s32[8,1], index: 1, kind: input, shape index: {}]
  %s2 = inlined_call_operand.hbm [shape: f32[1,1,128], index: 2, kind: output, shape index: {}]
  %s3 = sld [smem:[#allocation0]]
  $region18: #{tpu_custom_call.1} parent=0
    _
  %s5 = ssub.s32 1, %s3
  %s6 = scalar_select 0, %s5, %s3
  $region1: #{tpu_custom_call.1} parent=0
    #allocation2 [shape = 'u8[512]{0}', space=vmem, size = 0x400, scoped, tag = 'output window, operand 0, single buffered']
    #allocation3 [shape = 's32[1]{0}', space=sflag, size = 0x4, scoped, tag = 'scoped memory for tpu_custom_call.1']
    %7 = vsyncpa [#allocation3], 0
    // Predicated region
    $region2: #{tpu_custom_call.1} parent=1 // pred_check
      _
    $region3: #{tpu_custom_call.1} parent=1 // pred_check_branch
      %9 = sbr.rel (0) target = $region5
    $region4: #{tpu_custom_call.1} parent=1 // pred_region
      _
    $region5: #{tpu_custom_call.1} parent=1 // pred_fallthru
      _
    // Predicated region
    $region6: #{tpu_custom_call.1} parent=1 // pred_check
      _
    $region7: #{tpu_custom_call.1} parent=1 // pred_check_branch
      %11 = sbr.rel (0) target = $region9
    $region8: #{tpu_custom_call.1} parent=1 // pred_region
      _
    $region9: #{tpu_custom_call.1} parent=1 // pred_fallthru
      _
    %v12 = vld [vmem:[%s0] sm:$0xff]
    %v13 = vld [vmem:[%s1] sm:$0xff]
    %vm14 = vcmask 261120
    %v15 = vsel %vm14, %v12, -inf
    %16 = vmax.xlane.f32.xlu0 %v15
    %v17 = vpop.xlane.xlu0 %16
    %v18 = vsub.f32 %v12, %v17
    %v19 = vmul.f32 %v18, 1.442695
    %v20 = vpow.pop %v19
    %v21 = vsel %vm14, %v20, 0.0
    %22 = vadd.xlane.f32.xlu0 %v21
    %v23 = vpop.xlane.xlu0 %22
    %v24 = vlaneseq
    %v25 = vand.u32 %v24, 127
    %26 = vset.pattern.permute.xlu0 0
    %27 = vperm.xlu0 %26, %v13
    %v28 = vpop.permute.xlu0 %27
    %vm29 = vcmp.eq.s32.totalorder %v25, %v28
    %v30 = vsel %vm29, 1, 0
    %v31 = vcvt.s32.f32 %v30
    %v32 = vmul.f32 %v20, %v31
    %v33 = vsel %vm14, %v32, 0.0
    %34 = vadd.xlane.f32.xlu0 %v33
    %v35 = vpop.xlane.xlu0 %34
    %v36 = vrcp.pop %v23
    %v37 = vmul.f32 %v35, %v36
    %v38 = vsub.f32 1.0, %v37
    %v39 = vmul.f32 %v38, %v38
    %v40 = vmul.f32 %v39, -0.5
    %v41 = vadd.f32 %v37, 1e-06
    %v42 = vlog2.pop %v41
    %v43 = vmul.f32 %v42, 0.6931472
    %v44 = vmul.f32 %v40, %v43
    %v45 = vlaneseq
    %v46 = vshrl.u32 %v45, 7
    %s47 = smul.u32 0, 8
    %v48 = vstv %s47
    %v49 = vadd.s32 %v46, %v48
    %vm50 = vcmp.lt.s32.totalorder %v49, 8
    %v51 = vsel %vm50, %v44, 0.0
    %vm52 = vcmask 7168
    %v53 = vsel %vm52, %v51, 0.0
    %54 = vadd.xlane.f32.xlu0 %v53
    %v55 = vpop.xlane.xlu0 %54
    %v56 = vrot.slane %v55, 4
    %v57 = vadd.f32 %v55, %v56
    %v58 = vrot.slane %v57, 2
    %v59 = vadd.f32 %v57, %v58
    %v60 = vrot.slane %v59, 1
    %v61 = vadd.f32 %v59, %v60
    %s62 = vtos %v61
    %v63 = vstv %s62
    %64 = vst [vmem:[#allocation2] sm:$0x1] %v63
    // Predicated region
    $region10: #{tpu_custom_call.1} parent=1 // pred_check
      _
    $region11: #{tpu_custom_call.1} parent=1 // pred_check_branch
      %66 = sbr.rel (0) target = $region13
    $region12: #{tpu_custom_call.1} parent=1 // pred_region
      %s68 = ssub.s32 16, 16
      %69 = vsyncadd [#allocation3], %s68
      %s71 = sshll.u32 [#allocation2], 4
      %s72 = int_to_ptr.vmem [resolvable:$true] %s71
      %74 = dma.vmem_to_hbm [thread:$0]  %s72, 16, %s2, [#allocation3]
    $region13: #{tpu_custom_call.1} parent=1 // pred_fallthru
      _
    // Predicated region
    $region14: #{tpu_custom_call.1} parent=1 // pred_check
      _
    $region15: #{tpu_custom_call.1} parent=1 // pred_check_branch
      %76 = sbr.rel (0) target = $region17
    $region16: #{tpu_custom_call.1} parent=1 // pred_region
      %77 = dma.done [#allocation3], 16
    $region17: #{tpu_custom_call.1} parent=1 // pred_fallthru
      _
    %78 = vsyncpa [#allocation3], 1

</llo_original>
